<compile_context>
chip_gen: v7x
topology: tpu7x:2x2x1
jax: 0.10.0
libtpu: 0.0.40
codegen_flags: <defaults>
</compile_context>

<pallas_src>
import functools

import jax
import jax.numpy as jnp
from jax.experimental import pallas as pl
from jax.experimental.pallas import tpu as pltpu


def _double_conv_kernel(x_ref, w1_ref, s1_ref, t1_ref, w2_ref, s2_ref, t2_ref,
                        out_ref, *, NB, H, W, C, K, PAD):
    """Fused double conv for NB batch elements, lane-packed layout.

    x_ref  : (NB, H+2*PAD, W*C)   row-zero-padded input, channels in lanes
    w*_ref : (K*W*C, W*C)         lowered (block-Toeplitz) conv weights
    s*_ref : (1, W*C)             BN scale, replicated across w (f32)
    t*_ref : (1, W*C)             BN shift, replicated across w (f32)
    out_ref: (NB, H, W*C)
    """
    WC = W * C
    cdt = w1_ref.dtype  # MXU operand dtype (f32 or bf16)

    # ---- conv1: one fused MXU dot over an (NB*H, K*WC) im2row slab ---------
    # Column blocks are lane-aligned 128-wide copies of kh-shifted windows;
    # row blocks stack the batch elements into the matmul M dimension.
    lhs1 = jnp.concatenate(
        [jnp.concatenate([x_ref[n, kh:kh + H, :] for kh in range(K)], axis=1)
         for n in range(NB)],
        axis=0)                                                  # (NB*H, K*WC)
    acc1 = jnp.dot(lhs1, w1_ref[...], preferred_element_type=jnp.float32)
    # BN1 scale/shift applied post-dot in f32 (keeps bf16 weight path accurate)
    y1 = jnp.maximum(acc1 * s1_ref[...] + t1_ref[...], 0.0)     # (NB*H, WC)
    y1c = y1.astype(cdt)                                         # single cast

    # ---- conv2: row-only in-register zero re-pad per batch, fused dot ------
    zrow = jnp.zeros((PAD, WC), cdt)
    lhs2 = jnp.concatenate(
        [jnp.concatenate(
            [jnp.concatenate([zrow, y1c[n * H:(n + 1) * H, :], zrow],
                             axis=0)[kh:kh + H, :] for kh in range(K)],
            axis=1)
         for n in range(NB)],
        axis=0)                                                  # (NB*H, K*WC)
    acc2 = jnp.dot(lhs2, w2_ref[...], preferred_element_type=jnp.float32)
    y2 = jnp.maximum(acc2 * s2_ref[...] + t2_ref[...], 0.0)

    # Lane-dense, sublane-aligned full-width stores (H multiple of 8).
    for n in range(NB):
        out_ref[n] = y2[n * H:(n + 1) * H, :].astype(out_ref.dtype)


def _fold_bn(gamma, beta, mean, var, eps=1e-5):
    scale = gamma / jnp.sqrt(var + eps)
    shift = beta - mean * scale
    return scale, shift


def _lower_conv_weight(w_khkwio, *, W, C, K, PAD, dtype):
    """Build block-Toeplitz lowered weight (K*W*Cin, W*Cout).

    B[kh*WC + w'*C + ci, w*C + co] = w[kh, w'-w+PAD, ci, co] if the kw offset
    is in range, else 0.  Zero-padding along W is baked into the zero blocks,
    so the kernel only needs row padding on the activations.
    """
    sel = (jnp.arange(W)[None, :, None]
           == jnp.arange(W)[None, None, :] + jnp.arange(K)[:, None, None] - PAD)
    b = jnp.einsum("kpw,hkio->hpiwo", sel.astype(w_khkwio.dtype), w_khkwio)
    return b.reshape(K * W * C, W * C).astype(dtype)


def prepare_params(w1, s1, t1, w2, s2, t2, *, W, C, K, PAD,
                   compute_dtype=jnp.float32):
    """One-time preprocessing (inference weights are static): lower conv
    weights to block-Toeplitz form and tile BN scale/shift across W lanes."""
    b1 = _lower_conv_weight(w1, W=W, C=C, K=K, PAD=PAD, dtype=compute_dtype)
    b2 = _lower_conv_weight(w2, W=W, C=C, K=K, PAD=PAD, dtype=compute_dtype)
    WC = W * C
    s1p = jnp.tile(s1.reshape(-1), W).reshape(1, WC).astype(jnp.float32)
    t1p = jnp.tile(t1.reshape(-1), W).reshape(1, WC).astype(jnp.float32)
    s2p = jnp.tile(s2.reshape(-1), W).reshape(1, WC).astype(jnp.float32)
    t2p = jnp.tile(t2.reshape(-1), W).reshape(1, WC).astype(jnp.float32)
    return (b1, s1p, t1p, b2, s2p, t2p)


def middle_double_conv(x_nchw, params, *, K=3, PAD=1,
                       compute_dtype=jnp.float32, batches_per_step=None):
    """x_nchw: (N, C, H, W) f32; params from prepare_params().
    Returns (N, C, H, W) f32.

    batches_per_step=None -> all N in one grid step (best on 1-TC v5e/v6e).
    batches_per_step=N//2 (or 1) -> grid splits batches across v7x's 2 TCs.
    """
    N, C, H, W = x_nchw.shape
    nb = N if batches_per_step is None else batches_per_step
    assert N % nb == 0, "batches_per_step must divide N"
    Hp = H + 2 * PAD
    WC = W * C
    b1, s1p, t1p, b2, s2p, t2p = params

    # NCHW -> NHWC, pad rows only (column padding lives in the lowered
    # weights), pack channels into the lane axis: (N, Hp, W*C).
    # TODO(synk): keep activations in this packed layout across UNet layers to
    # avoid the per-call transpose/pad/reshape round trips.
    x = jnp.transpose(x_nchw, (0, 2, 3, 1))
    xr = jnp.pad(x, ((0, 0), (PAD, PAD), (0, 0), (0, 0))).reshape(N, Hp, WC)
    xr = xr.astype(compute_dtype)  # bf16 path: bf16 input DMA / half VMEM

    kernel = functools.partial(_double_conv_kernel,
                               NB=nb, H=H, W=W, C=C, K=K, PAD=PAD)

    # VMEM budget from actual buffer sizes (double-buffered) + headroom.
    cbytes = jnp.dtype(compute_dtype).itemsize
    vmem_bytes = 2 * (nb * Hp * WC * cbytes          # x block
                      + nb * H * WC * 4              # out block
                      + 2 * K * WC * WC * cbytes     # two lowered weights
                      + 4 * WC * 4)                  # scale/shift rows
    vmem_bytes = int(max(vmem_bytes + (4 << 20), 16 << 20))

    out = pl.pallas_call(
        kernel,
        out_shape=jax.ShapeDtypeStruct((N, H, WC), jnp.float32),
        grid_spec=pltpu.PrefetchScalarGridSpec(
            num_scalar_prefetch=0,
            grid=(N // nb,),
            in_specs=[
                pl.BlockSpec((nb, Hp, WC), lambda n: (n, 0, 0)),
                pl.BlockSpec((K * WC, WC), lambda n: (0, 0)),
                pl.BlockSpec((1, WC), lambda n: (0, 0)),
                pl.BlockSpec((1, WC), lambda n: (0, 0)),
                pl.BlockSpec((K * WC, WC), lambda n: (0, 0)),
                pl.BlockSpec((1, WC), lambda n: (0, 0)),
                pl.BlockSpec((1, WC), lambda n: (0, 0)),
            ],
            out_specs=pl.BlockSpec((nb, H, WC), lambda n: (n, 0, 0)),
        ),
        compiler_params=pltpu.CompilerParams(
            dimension_semantics=("parallel",),
            vmem_limit_bytes=vmem_bytes),
    )(xr, b1, s1p, t1p, b2, s2p, t2p)

    # (N, H, W*C) -> (N, H, W, C) -> NCHW
    return jnp.transpose(out.reshape(N, H, W, C), (0, 3, 1, 2))


def _reference(x_nchw, w1_oihw, s1, t1, w2_oihw, s2, t2):
    """Pure-JAX reference (NCHW, OIHW) for verification."""
    dn = ("NCHW", "OIHW", "NCHW")

    def block(x, w, s, t):
        y = jax.lax.conv_general_dilated(x, w, (1, 1), [(1, 1), (1, 1)],
                                         dimension_numbers=dn)
        y = y * s.reshape(1, -1, 1, 1) + t.reshape(1, -1, 1, 1)
        return jnp.maximum(y, 0.0)

    return block(block(x_nchw, w1_oihw, s1, t1), w2_oihw, s2, t2)


if __name__ == "__main__":
    # options: filters[0]=4, feat_multiplier=2 -> features=8; kernel 3, stride 1,
    # padding 1, padding_mode 'zeros', dropout=False (inference).
    N, C, H, W = 2, 8, 16, 16
    K, PAD = 3, 1

    key = jax.random.PRNGKey(0)
    ks = jax.random.split(key, 9)

    x = jax.random.normal(ks[0], (N, C, H, W), jnp.float32)

    # Conv weights in PyTorch OIHW layout, then kernel layout (KH, KW, Cin, Cout).
    w1_oihw = jax.random.normal(ks[1], (C, C, K, K), jnp.float32) * 0.1
    w2_oihw = jax.random.normal(ks[2], (C, C, K, K), jnp.float32) * 0.1
    w1 = jnp.transpose(w1_oihw, (2, 3, 1, 0))
    w2 = jnp.transpose(w2_oihw, (2, 3, 1, 0))

    # BatchNorm params (deterministic, non-trivial), folded to scale/shift.
    g1 = 1.0 + 0.1 * jax.random.normal(ks[3], (C,), jnp.float32)
    b1 = 0.1 * jax.random.normal(ks[4], (C,), jnp.float32)
    m1 = 0.1 * jax.random.normal(ks[5], (C,), jnp.float32)
    v1 = 1.0 + 0.1 * jnp.abs(jax.random.normal(ks[6], (C,), jnp.float32))
    g2 = 1.0 + 0.1 * jax.random.normal(ks[7], (C,), jnp.float32)
    b2 = 0.1 * jax.random.normal(ks[8], (C,), jnp.float32)
    m2 = jnp.zeros((C,), jnp.float32)
    v2 = jnp.ones((C,), jnp.float32)

    s1, t1 = _fold_bn(g1, b1, m1, v1)
    s2, t2 = _fold_bn(g2, b2, m2, v2)

    ref = _reference(x, w1_oihw, s1, t1, w2_oihw, s2, t2)

    # ---- f32 path, all batches stacked in M (one grid step): tight check ---
    params_f32 = prepare_params(w1, s1, t1, w2, s2, t2, W=W, C=C, K=K, PAD=PAD,
                                compute_dtype=jnp.float32)
    fwd_f32 = jax.jit(lambda xx, pp: middle_double_conv(xx, pp, K=K, PAD=PAD,
                                                        compute_dtype=jnp.float32))
    out = jax.block_until_ready(fwd_f32(x, params_f32))
    assert out.shape == (N, C, H, W)
    err = float(jnp.max(jnp.abs(out - ref)))
    assert jnp.allclose(out, ref, atol=1e-3, rtol=1e-3), err

    # ---- f32 path, one batch per grid step (v7x per-core split): tight -----
    fwd_split = jax.jit(lambda xx, pp: middle_double_conv(
        xx, pp, K=K, PAD=PAD, compute_dtype=jnp.float32, batches_per_step=1))
    out_split = jax.block_until_ready(fwd_split(x, params_f32))
    err_split = float(jnp.max(jnp.abs(out_split - ref)))
    assert jnp.allclose(out_split, ref, atol=1e-3, rtol=1e-3), err_split

    # ---- bf16 MXU operand path (v6e/v7x fast path): loose check ------------
    params_bf16 = prepare_params(w1, s1, t1, w2, s2, t2, W=W, C=C, K=K, PAD=PAD,
                                 compute_dtype=jnp.bfloat16)
    fwd_bf16 = jax.jit(lambda xx, pp: middle_double_conv(
        xx, pp, K=K, PAD=PAD, compute_dtype=jnp.bfloat16))
    out_bf16 = jax.block_until_ready(fwd_bf16(x, params_bf16))
    err_bf16 = float(jnp.max(jnp.abs(out_bf16 - ref)))
    assert jnp.allclose(out_bf16, ref, atol=1e-1, rtol=5e-2), err_bf16

    print("KERNEL_OK")
</pallas_src>

<mosaic_0001>
module attributes {stable_mosaic.version = 11 : i64} {
  func.func @_double_conv_kernel(%arg0: i32, %arg1: memref<2x18x128xf32, #tpu.memory_space<vmem>>, %arg2: memref<384x128xf32, #tpu.memory_space<vmem>>, %arg3: memref<1x128xf32, #tpu.memory_space<vmem>>, %arg4: memref<1x128xf32, #tpu.memory_space<vmem>>, %arg5: memref<384x128xf32, #tpu.memory_space<vmem>>, %arg6: memref<1x128xf32, #tpu.memory_space<vmem>>, %arg7: memref<1x128xf32, #tpu.memory_space<vmem>>, %arg8: memref<2x16x128xf32, #tpu.memory_space<vmem>>) attributes {dimension_semantics = [#tpu.dimension_semantics<parallel>], iteration_bounds = array<i64: 1>, scalar_prefetch = 0 : i64, scratch_operands = 0 : i64, tpu.core_type = #tpu.core_type<tc>, window_params = [{transform_indices = @transform_0, window_bounds = array<i64: 2, 18, 128>}, {pipeline_mode = #tpu.pipeline_mode<synchronous>, transform_indices = @transform_1, window_bounds = array<i64: 384, 128>}, {pipeline_mode = #tpu.pipeline_mode<synchronous>, transform_indices = @transform_2, window_bounds = array<i64: 1, 128>}, {pipeline_mode = #tpu.pipeline_mode<synchronous>, transform_indices = @transform_3, window_bounds = array<i64: 1, 128>}, {pipeline_mode = #tpu.pipeline_mode<synchronous>, transform_indices = @transform_4, window_bounds = array<i64: 384, 128>}, {pipeline_mode = #tpu.pipeline_mode<synchronous>, transform_indices = @transform_5, window_bounds = array<i64: 1, 128>}, {pipeline_mode = #tpu.pipeline_mode<synchronous>, transform_indices = @transform_6, window_bounds = array<i64: 1, 128>}, {transform_indices = @transform_7, window_bounds = array<i64: 2, 16, 128>}]} {
    %c0 = arith.constant 0 : index
    %c0_0 = arith.constant 0 : index
    %c0_1 = arith.constant 0 : index
    %0 = vector.load %arg1[%c0, %c0_0, %c0_1] : memref<2x18x128xf32, #tpu.memory_space<vmem>>, vector<1x16x128xf32>
    %1 = vector.shape_cast %0 : vector<1x16x128xf32> to vector<16x128xf32>
    %c0_2 = arith.constant 0 : index
    %c1 = arith.constant 1 : index
    %c0_3 = arith.constant 0 : index
    %2 = vector.load %arg1[%c0_2, %c1, %c0_3] : memref<2x18x128xf32, #tpu.memory_space<vmem>>, vector<1x16x128xf32>
    %3 = vector.shape_cast %2 : vector<1x16x128xf32> to vector<16x128xf32>
    %c0_4 = arith.constant 0 : index
    %c2 = arith.constant 2 : index
    %c0_5 = arith.constant 0 : index
    %4 = vector.load %arg1[%c0_4, %c2, %c0_5] : memref<2x18x128xf32, #tpu.memory_space<vmem>>, vector<1x16x128xf32>
    %5 = vector.shape_cast %4 : vector<1x16x128xf32> to vector<16x128xf32>
    %6 = tpu.concatenate %1, %3, %5 in 1 : vector<16x128xf32>, vector<16x128xf32>, vector<16x128xf32> -> vector<16x384xf32>
    %c1_6 = arith.constant 1 : index
    %c0_7 = arith.constant 0 : index
    %c0_8 = arith.constant 0 : index
    %7 = vector.load %arg1[%c1_6, %c0_7, %c0_8] : memref<2x18x128xf32, #tpu.memory_space<vmem>>, vector<1x16x128xf32>
    %8 = vector.shape_cast %7 : vector<1x16x128xf32> to vector<16x128xf32>
    %c1_9 = arith.constant 1 : index
    %c1_10 = arith.constant 1 : index
    %c0_11 = arith.constant 0 : index
    %9 = vector.load %arg1[%c1_9, %c1_10, %c0_11] : memref<2x18x128xf32, #tpu.memory_space<vmem>>, vector<1x16x128xf32>
    %10 = vector.shape_cast %9 : vector<1x16x128xf32> to vector<16x128xf32>
    %c1_12 = arith.constant 1 : index
    %c2_13 = arith.constant 2 : index
    %c0_14 = arith.constant 0 : index
    %11 = vector.load %arg1[%c1_12, %c2_13, %c0_14] : memref<2x18x128xf32, #tpu.memory_space<vmem>>, vector<1x16x128xf32>
    %12 = vector.shape_cast %11 : vector<1x16x128xf32> to vector<16x128xf32>
    %13 = tpu.concatenate %8, %10, %12 in 1 : vector<16x128xf32>, vector<16x128xf32>, vector<16x128xf32> -> vector<16x384xf32>
    %14 = tpu.concatenate %6, %13 in 0 : vector<16x384xf32>, vector<16x384xf32> -> vector<32x384xf32>
    %c0_15 = arith.constant 0 : index
    %c0_16 = arith.constant 0 : index
    %15 = vector.load %arg2[%c0_15, %c0_16] : memref<384x128xf32, #tpu.memory_space<vmem>>, vector<384x128xf32>
    %cst = arith.constant dense<0.000000e+00> : vector<32x128xf32>
    %16 = tpu.matmul %14, %15, %cst {dimension_numbers = #tpu.dot_dimension_numbers<[1], [0], [0], [1], [0, 0, 1, 1], [], []>} : vector<32x384xf32>, vector<384x128xf32>, vector<32x128xf32> -> vector<32x128xf32>
    %c0_17 = arith.constant 0 : index
    %c0_18 = arith.constant 0 : index
    %17 = vector.load %arg3[%c0_17, %c0_18] : memref<1x128xf32, #tpu.memory_space<vmem>>, vector<1x128xf32>
    %18 = vector.broadcast %17 : vector<1x128xf32> to vector<32x128xf32>
    %19 = arith.mulf %16, %18 : vector<32x128xf32>
    %c0_19 = arith.constant 0 : index
    %c0_20 = arith.constant 0 : index
    %20 = vector.load %arg4[%c0_19, %c0_20] : memref<1x128xf32, #tpu.memory_space<vmem>>, vector<1x128xf32>
    %21 = vector.broadcast %20 : vector<1x128xf32> to vector<32x128xf32>
    %22 = arith.addf %19, %21 : vector<32x128xf32>
    %cst_21 = arith.constant 0.000000e+00 : f32
    %23 = vector.broadcast %cst_21 : f32 to vector<32x128xf32>
    %24 = arith.maximumf %22, %23 : vector<32x128xf32>
    %cst_22 = arith.constant 0.000000e+00 : f32
    %25 = vector.broadcast %cst_22 : f32 to vector<1x128xf32>
    %26 = vector.extract_strided_slice %24 {offsets = [0, 0], sizes = [16, 128], strides = [1, 1]} : vector<32x128xf32> to vector<16x128xf32>
    %27 = tpu.concatenate %25, %26, %25 in 0 : vector<1x128xf32>, vector<16x128xf32>, vector<1x128xf32> -> vector<18x128xf32>
    %28 = vector.extract_strided_slice %27 {offsets = [0, 0], sizes = [16, 128], strides = [1, 1]} : vector<18x128xf32> to vector<16x128xf32>
    %29 = vector.extract_strided_slice %24 {offsets = [0, 0], sizes = [16, 128], strides = [1, 1]} : vector<32x128xf32> to vector<16x128xf32>
    %30 = tpu.concatenate %25, %29, %25 in 0 : vector<1x128xf32>, vector<16x128xf32>, vector<1x128xf32> -> vector<18x128xf32>
    %31 = vector.extract_strided_slice %30 {offsets = [1, 0], sizes = [16, 128], strides = [1, 1]} : vector<18x128xf32> to vector<16x128xf32>
    %32 = vector.extract_strided_slice %24 {offsets = [0, 0], sizes = [16, 128], strides = [1, 1]} : vector<32x128xf32> to vector<16x128xf32>
    %33 = tpu.concatenate %25, %32, %25 in 0 : vector<1x128xf32>, vector<16x128xf32>, vector<1x128xf32> -> vector<18x128xf32>
    %34 = vector.extract_strided_slice %33 {offsets = [2, 0], sizes = [16, 128], strides = [1, 1]} : vector<18x128xf32> to vector<16x128xf32>
    %35 = tpu.concatenate %28, %31, %34 in 1 : vector<16x128xf32>, vector<16x128xf32>, vector<16x128xf32> -> vector<16x384xf32>
    %36 = vector.extract_strided_slice %24 {offsets = [16, 0], sizes = [16, 128], strides = [1, 1]} : vector<32x128xf32> to vector<16x128xf32>
    %37 = tpu.concatenate %25, %36, %25 in 0 : vector<1x128xf32>, vector<16x128xf32>, vector<1x128xf32> -> vector<18x128xf32>
    %38 = vector.extract_strided_slice %37 {offsets = [0, 0], sizes = [16, 128], strides = [1, 1]} : vector<18x128xf32> to vector<16x128xf32>
    %39 = vector.extract_strided_slice %24 {offsets = [16, 0], sizes = [16, 128], strides = [1, 1]} : vector<32x128xf32> to vector<16x128xf32>
    %40 = tpu.concatenate %25, %39, %25 in 0 : vector<1x128xf32>, vector<16x128xf32>, vector<1x128xf32> -> vector<18x128xf32>
    %41 = vector.extract_strided_slice %40 {offsets = [1, 0], sizes = [16, 128], strides = [1, 1]} : vector<18x128xf32> to vector<16x128xf32>
    %42 = vector.extract_strided_slice %24 {offsets = [16, 0], sizes = [16, 128], strides = [1, 1]} : vector<32x128xf32> to vector<16x128xf32>
    %43 = tpu.concatenate %25, %42, %25 in 0 : vector<1x128xf32>, vector<16x128xf32>, vector<1x128xf32> -> vector<18x128xf32>
    %44 = vector.extract_strided_slice %43 {offsets = [2, 0], sizes = [16, 128], strides = [1, 1]} : vector<18x128xf32> to vector<16x128xf32>
    %45 = tpu.concatenate %38, %41, %44 in 1 : vector<16x128xf32>, vector<16x128xf32>, vector<16x128xf32> -> vector<16x384xf32>
    %46 = tpu.concatenate %35, %45 in 0 : vector<16x384xf32>, vector<16x384xf32> -> vector<32x384xf32>
    %c0_23 = arith.constant 0 : index
    %c0_24 = arith.constant 0 : index
    %47 = vector.load %arg5[%c0_23, %c0_24] : memref<384x128xf32, #tpu.memory_space<vmem>>, vector<384x128xf32>
    %cst_25 = arith.constant dense<0.000000e+00> : vector<32x128xf32>
    %48 = tpu.matmul %46, %47, %cst_25 {dimension_numbers = #tpu.dot_dimension_numbers<[1], [0], [0], [1], [0, 0, 1, 1], [], []>} : vector<32x384xf32>, vector<384x128xf32>, vector<32x128xf32> -> vector<32x128xf32>
    %c0_26 = arith.constant 0 : index
    %c0_27 = arith.constant 0 : index
    %49 = vector.load %arg6[%c0_26, %c0_27] : memref<1x128xf32, #tpu.memory_space<vmem>>, vector<1x128xf32>
    %50 = vector.broadcast %49 : vector<1x128xf32> to vector<32x128xf32>
    %51 = arith.mulf %48, %50 : vector<32x128xf32>
    %c0_28 = arith.constant 0 : index
    %c0_29 = arith.constant 0 : index
    %52 = vector.load %arg7[%c0_28, %c0_29] : memref<1x128xf32, #tpu.memory_space<vmem>>, vector<1x128xf32>
    %53 = vector.broadcast %52 : vector<1x128xf32> to vector<32x128xf32>
    %54 = arith.addf %51, %53 : vector<32x128xf32>
    %cst_30 = arith.constant 0.000000e+00 : f32
    %55 = vector.broadcast %cst_30 : f32 to vector<32x128xf32>
    %56 = arith.maximumf %54, %55 : vector<32x128xf32>
    %57 = vector.extract_strided_slice %56 {offsets = [0, 0], sizes = [16, 128], strides = [1, 1]} : vector<32x128xf32> to vector<16x128xf32>
    %c0_31 = arith.constant 0 : index
    %c0_32 = arith.constant 0 : index
    %c0_33 = arith.constant 0 : index
    %58 = vector.load %arg8[%c0_31, %c0_32, %c0_33] : memref<2x16x128xf32, #tpu.memory_space<vmem>>, vector<1x16x128xf32>
    %59 = vector.shape_cast %58 : vector<1x16x128xf32> to vector<16x128xf32>
    %60 = vector.shape_cast %57 : vector<16x128xf32> to vector<1x16x128xf32>
    tpu.vector_store %arg8[%c0_31, %c0_32, %c0_33], %60 {strides = array<i32>} : memref<2x16x128xf32, #tpu.memory_space<vmem>>, vector<1x16x128xf32>,
    %61 = vector.extract_strided_slice %56 {offsets = [16, 0], sizes = [16, 128], strides = [1, 1]} : vector<32x128xf32> to vector<16x128xf32>
    %c1_34 = arith.constant 1 : index
    %c0_35 = arith.constant 0 : index
    %c0_36 = arith.constant 0 : index
    %62 = vector.load %arg8[%c1_34, %c0_35, %c0_36] : memref<2x16x128xf32, #tpu.memory_space<vmem>>, vector<1x16x128xf32>
    %63 = vector.shape_cast %62 : vector<1x16x128xf32> to vector<16x128xf32>
    %64 = vector.shape_cast %61 : vector<16x128xf32> to vector<1x16x128xf32>
    tpu.vector_store %arg8[%c1_34, %c0_35, %c0_36], %64 {strides = array<i32>} : memref<2x16x128xf32, #tpu.memory_space<vmem>>, vector<1x16x128xf32>,
    return
  }
  func.func @transform_0(%arg0: i32) -> (i32, i32, i32) {
    %c0_i32 = arith.constant 0 : i32
    %c0_i32_0 = arith.constant 0 : i32
    %c0_i32_1 = arith.constant 0 : i32
    return %arg0, %c0_i32, %c0_i32_0 : i32, i32, i32
  }
  func.func @transform_1(%arg0: i32) -> (i32, i32) {
    %c0_i32 = arith.constant 0 : i32
    %c0_i32_0 = arith.constant 0 : i32
    %c0_i32_1 = arith.constant 0 : i32
    return %c0_i32, %c0_i32_0 : i32, i32
  }
  func.func @transform_2(%arg0: i32) -> (i32, i32) {
    %c0_i32 = arith.constant 0 : i32
    %c0_i32_0 = arith.constant 0 : i32
    %c0_i32_1 = arith.constant 0 : i32
    return %c0_i32, %c0_i32_0 : i32, i32
  }
  func.func @transform_3(%arg0: i32) -> (i32, i32) {
    %c0_i32 = arith.constant 0 : i32
    %c0_i32_0 = arith.constant 0 : i32
    %c0_i32_1 = arith.constant 0 : i32
    return %c0_i32, %c0_i32_0 : i32, i32
  }
  func.func @transform_4(%arg0: i32) -> (i32, i32) {
    %c0_i32 = arith.constant 0 : i32
    %c0_i32_0 = arith.constant 0 : i32
    %c0_i32_1 = arith.constant 0 : i32
    return %c0_i32, %c0_i32_0 : i32, i32
  }
  func.func @transform_5(%arg0: i32) -> (i32, i32) {
    %c0_i32 = arith.constant 0 : i32
    %c0_i32_0 = arith.constant 0 : i32
    %c0_i32_1 = arith.constant 0 : i32
    return %c0_i32, %c0_i32_0 : i32, i32
  }
  func.func @transform_6(%arg0: i32) -> (i32, i32) {
    %c0_i32 = arith.constant 0 : i32
    %c0_i32_0 = arith.constant 0 : i32
    %c0_i32_1 = arith.constant 0 : i32
    return %c0_i32, %c0_i32_0 : i32, i32
  }
  func.func @transform_7(%arg0: i32) -> (i32, i32, i32) {
    %c0_i32 = arith.constant 0 : i32
    %c0_i32_0 = arith.constant 0 : i32
    %c0_i32_1 = arith.constant 0 : i32
    return %arg0, %c0_i32, %c0_i32_0 : i32, i32, i32
  }
}

</mosaic_0001>

<llo_original>
// kernel: _lambda_.1
$region0: #{_lambda_.1}
  #allocation0 [shape = 'u32[]', space=smem, size = 0x4, offset = 0x4, fixed_abs, tag = 'smem constant byte address 0x4 - core index']
  #allocation1 [shape = 'u32[144,128]{1,0:T(1,128)}', space=vmem, size = 0x12000, scoped, tag = 'internal scratch']
  %s0 = inlined_call_operand.vmem [shape: f32[2,18,128], index: 0, kind: input, shape index: {}]
  %s1 = inlined_call_operand.vmem [shape: f32[384,128], index: 1, kind: input, shape index: {}]
  %s2 = inlined_call_operand.vmem [shape: f32[1,128], index: 2, kind: input, shape index: {}]
  %s3 = inlined_call_operand.vmem [shape: f32[1,128], index: 3, kind: input, shape index: {}]
  %s4 = inlined_call_operand.vmem [shape: f32[384,128], index: 4, kind: input, shape index: {}]
  %s5 = inlined_call_operand.vmem [shape: f32[1,128], index: 5, kind: input, shape index: {}]
  %s6 = inlined_call_operand.vmem [shape: f32[1,128], index: 6, kind: input, shape index: {}]
  %s7 = inlined_call_operand.vmem [shape: f32[2,16,128], index: 7, kind: output, shape index: {}]
  %s8 = sld [smem:[#allocation0]]
  $region38: #{_lambda_.1} parent=0
    _
  %s10 = ssub.s32 1, %s8
  %s11 = scalar_select 0, %s10, %s8
  // Predicated region
  $region2: #{_lambda_.1} parent=0 // pred_check
    _
  $region3: #{_lambda_.1} parent=0 // pred_check_branch
    %13 = sbr.rel (0) target = $region5
  $region4: #{_lambda_.1} parent=0 // pred_region
    _
  $region5: #{_lambda_.1} parent=0 // pred_fallthru
    _
  // Predicated region
  $region6: #{_lambda_.1} parent=0 // pred_check
    _
  $region7: #{_lambda_.1} parent=0 // pred_check_branch
    %15 = sbr.rel (0) target = $region9
  $region8: #{_lambda_.1} parent=0 // pred_region
    _
  $region9: #{_lambda_.1} parent=0 // pred_fallthru
    _
  // Predicated region
  $region10: #{_lambda_.1} parent=0 // pred_check
    _
  $region11: #{_lambda_.1} parent=0 // pred_check_branch
    %17 = sbr.rel (0) target = $region13
  $region12: #{_lambda_.1} parent=0 // pred_region
    _
  $region13: #{_lambda_.1} parent=0 // pred_fallthru
    _
  // Predicated region
  $region14: #{_lambda_.1} parent=0 // pred_check
    _
  $region15: #{_lambda_.1} parent=0 // pred_check_branch
    %19 = sbr.rel (0) target = $region17
  $region16: #{_lambda_.1} parent=0 // pred_region
    _
  $region17: #{_lambda_.1} parent=0 // pred_fallthru
    _
  // Predicated region
  $region18: #{_lambda_.1} parent=0 // pred_check
    _
  $region19: #{_lambda_.1} parent=0 // pred_check_branch
    %21 = sbr.rel (0) target = $region21
  $region20: #{_lambda_.1} parent=0 // pred_region
    _
  $region21: #{_lambda_.1} parent=0 // pred_fallthru
    _
  // Predicated region
  $region22: #{_lambda_.1} parent=0 // pred_check
    _
  $region23: #{_lambda_.1} parent=0 // pred_check_branch
    %23 = sbr.rel (0) target = $region25
  $region24: #{_lambda_.1} parent=0 // pred_region
    _
  $region25: #{_lambda_.1} parent=0 // pred_fallthru
    _
  // Predicated region
  $region26: #{_lambda_.1} parent=0 // pred_check
    _
  $region27: #{_lambda_.1} parent=0 // pred_check_branch
    %25 = sbr.rel (0) target = $region29
  $region28: #{_lambda_.1} parent=0 // pred_region
    _
  $region29: #{_lambda_.1} parent=0 // pred_fallthru
    _
  %v26 = vld [vmem:[%s0] sm:$0xff]
  %v27 = vld [vmem:[%s0 + $0x8] sm:$0xff]
  %v28 = vld [vmem:[%s0 + $0x1] sm:$0xff]
  %v29 = vld [vmem:[%s0 + $0x9] sm:$0xff]
  %v30 = vld [vmem:[%s0 + $0x2] sm:$0xff]
  %v31 = vld [vmem:[%s0 + $0xa] sm:$0xff]
  %s32 = scalar_lea.vmem %s0, 24
  %v33 = vld [vmem:[%s32] sm:$0xff]
  %v34 = vld [vmem:[%s32 + $0x8] sm:$0xff]
  %v35 = vld [vmem:[%s32 + $0x1] sm:$0xff]
  %v36 = vld [vmem:[%s32 + $0x9] sm:$0xff]
  %v37 = vld [vmem:[%s32 + $0x2] sm:$0xff]
  %v38 = vld [vmem:[%s32 + $0xa] sm:$0xff]
  %v39 = vld [vmem:[%s1] sm:$0xff]
  %v40 = vld [vmem:[%s1 + $0x8] sm:$0xff]
  %v41 = vld [vmem:[%s1 + $0x10] sm:$0xff]
  %v42 = vld [vmem:[%s1 + $0x18] sm:$0xff]
  %v43 = vld [vmem:[%s1 + $0x20] sm:$0xff]
  %v44 = vld [vmem:[%s1 + $0x28] sm:$0xff]
  %v45 = vld [vmem:[%s1 + $0x30] sm:$0xff]
  %v46 = vld [vmem:[%s1 + $0x38] sm:$0xff]
  %v47 = vld [vmem:[%s1 + $0x40] sm:$0xff]
  %v48 = vld [vmem:[%s1 + $0x48] sm:$0xff]
  %v49 = vld [vmem:[%s1 + $0x50] sm:$0xff]
  %v50 = vld [vmem:[%s1 + $0x58] sm:$0xff]
  %v51 = vld [vmem:[%s1 + $0x60] sm:$0xff]
  %v52 = vld [vmem:[%s1 + $0x68] sm:$0xff]
  %v53 = vld [vmem:[%s1 + $0x70] sm:$0xff]
  %v54 = vld [vmem:[%s1 + $0x78] sm:$0xff]
  %v55 = vld [vmem:[%s1 + $0x80] sm:$0xff]
  %v56 = vld [vmem:[%s1 + $0x88] sm:$0xff]
  %v57 = vld [vmem:[%s1 + $0x90] sm:$0xff]
  %v58 = vld [vmem:[%s1 + $0x98] sm:$0xff]
  %v59 = vld [vmem:[%s1 + $0xa0] sm:$0xff]
  %v60 = vld [vmem:[%s1 + $0xa8] sm:$0xff]
  %v61 = vld [vmem:[%s1 + $0xb0] sm:$0xff]
  %v62 = vld [vmem:[%s1 + $0xb8] sm:$0xff]
  %v63 = vld [vmem:[%s1 + $0xc0] sm:$0xff]
  %v64 = vld [vmem:[%s1 + $0xc8] sm:$0xff]
  %v65 = vld [vmem:[%s1 + $0xd0] sm:$0xff]
  %v66 = vld [vmem:[%s1 + $0xd8] sm:$0xff]
  %v67 = vld [vmem:[%s1 + $0xe0] sm:$0xff]
  %v68 = vld [vmem:[%s1 + $0xe8] sm:$0xff]
  %v69 = vld [vmem:[%s1 + $0xf0] sm:$0xff]
  %v70 = vld [vmem:[%s1 + $0xf8] sm:$0xff]
  %v71 = vld [vmem:[%s1 + $0x100] sm:$0xff]
  %v72 = vld [vmem:[%s1 + $0x108] sm:$0xff]
  %v73 = vld [vmem:[%s1 + $0x110] sm:$0xff]
  %v74 = vld [vmem:[%s1 + $0x118] sm:$0xff]
  %v75 = vld [vmem:[%s1 + $0x120] sm:$0xff]
  %v76 = vld [vmem:[%s1 + $0x128] sm:$0xff]
  %v77 = vld [vmem:[%s1 + $0x130] sm:$0xff]
  %v78 = vld [vmem:[%s1 + $0x138] sm:$0xff]
  %v79 = vld [vmem:[%s1 + $0x140] sm:$0xff]
  %v80 = vld [vmem:[%s1 + $0x148] sm:$0xff]
  %v81 = vld [vmem:[%s1 + $0x150] sm:$0xff]
  %v82 = vld [vmem:[%s1 + $0x158] sm:$0xff]
  %v83 = vld [vmem:[%s1 + $0x160] sm:$0xff]
  %v84 = vld [vmem:[%s1 + $0x168] sm:$0xff]
  %v85 = vld [vmem:[%s1 + $0x170] sm:$0xff]
  %v86 = vld [vmem:[%s1 + $0x178] sm:$0xff]
  %87 = vmatprep.subr.mxu0 0.0
  %88 = vmatpush1.msra.mxu0 %v39
  %89 = vmatprep.subr.mxu0 0.0
  %90 = vmatpush1.msra.mxu0 %v40
  %91 = vmatprep.subr.mxu0 0.0
  %92 = vmatpush1.msra.mxu0 %v41
  %93 = vmatprep.subr.mxu0 0.0
  %94 = vmatpush1.msra.mxu0 %v42
  %95 = vmatprep.subr.mxu0 0.0
  %96 = vmatpush1.msra.mxu0 %v43
  %97 = vmatprep.subr.mxu0 0.0
  %98 = vmatpush1.msra.mxu0 %v44
  %99 = vmatprep.subr.mxu0 0.0
  %100 = vmatpush1.msra.mxu0 %v45
  %101 = vmatprep.subr.mxu0 0.0
  %102 = vmatpush1.msra.mxu0 %v46
  %103 = vmatprep.subr.mxu0 0.0
  %104 = vmatpush1.msra.mxu0 %v47
  %105 = vmatprep.subr.mxu0 0.0
  %106 = vmatpush1.msra.mxu0 %v48
  %107 = vmatprep.subr.mxu0 0.0
  %108 = vmatpush1.msra.mxu0 %v49
  %109 = vmatprep.subr.mxu0 0.0
  %110 = vmatpush1.msra.mxu0 %v50
  %111 = vmatprep.subr.mxu0 0.0
  %112 = vmatpush1.msra.mxu0 %v51
  %113 = vmatprep.subr.mxu0 0.0
  %114 = vmatpush1.msra.mxu0 %v52
  %115 = vmatprep.subr.mxu0 0.0
  %116 = vmatpush1.msra.mxu0 %v53
  %117 = vmatprep.subr.mxu0 0.0
  %118 = vmatpush1.msra.mxu0 %v54
  %119 = vmatprep.subr.mxu0 0.0
  %120 = vmatpush1.msra.mxu0 %v55
  %121 = vmatprep.subr.mxu0 0.0
  %122 = vmatpush1.msra.mxu0 %v56
  %123 = vmatprep.subr.mxu0 0.0
  %124 = vmatpush1.msra.mxu0 %v57
  %125 = vmatprep.subr.mxu0 0.0
  %126 = vmatpush1.msra.mxu0 %v58
  %127 = vmatprep.subr.mxu0 0.0
  %128 = vmatpush1.msra.mxu0 %v59
  %129 = vmatprep.subr.mxu0 0.0
  %130 = vmatpush1.msra.mxu0 %v60
  %131 = vmatprep.subr.mxu0 0.0
  %132 = vmatpush1.msra.mxu0 %v61
  %133 = vmatprep.subr.mxu0 0.0
  %134 = vmatpush1.msra.mxu0 %v62
  %135 = vmatprep.subr.mxu0 0.0
  %136 = vmatpush1.msra.mxu0 %v63
  %137 = vmatprep.subr.mxu0 0.0
  %138 = vmatpush1.msra.mxu0 %v64
  %139 = vmatprep.subr.mxu0 0.0
  %140 = vmatpush1.msra.mxu0 %v65
  %141 = vmatprep.subr.mxu0 0.0
  %142 = vmatpush1.msra.mxu0 %v66
  %143 = vmatprep.subr.mxu0 0.0
  %144 = vmatpush1.msra.mxu0 %v67
  %145 = vmatprep.subr.mxu0 0.0
  %146 = vmatpush1.msra.mxu0 %v68
  %147 = vmatprep.subr.mxu0 0.0
  %148 = vmatpush1.msra.mxu0 %v69
  %149 = vmatprep.subr.mxu0 0.0
  %150 = vmatpush1.msra.mxu0 %v70
  %151 = vmatprep.mubr.f32.mxu0 %v28
  %152 = vmatmul.mubr.f32.gmra.mrb[0].mxu0 %v26
  %v153 = vpop.f32.mrb[0].mxu0
  %v154 = vadd.f32 0.0, %v153
  %v155 = vpop.f32.mrb[0].mxu0
  %156 = vmatprep.mubr.f32.mxu0 %v29
  %157 = vmatmul.mubr.f32.gmra.mrb[0].mxu0 %v27
  %v158 = vpop.f32.mrb[0].mxu0
  %v159 = vadd.f32 0.0, %v158
  %v160 = vpop.f32.mrb[0].mxu0
  %161 = vmatprep.mubr.f32.mxu0 %v35
  %162 = vmatmul.mubr.f32.gmra.mrb[0].mxu0 %v33
  %v163 = vpop.f32.mrb[0].mxu0
  %v164 = vadd.f32 0.0, %v163
  %v165 = vpop.f32.mrb[0].mxu0
  %166 = vmatprep.mubr.f32.mxu0 %v36
  %167 = vmatmul.mubr.f32.gmra.mrb[0].mxu0 %v34
  %v168 = vpop.f32.mrb[0].mxu0
  %v169 = vadd.f32 0.0, %v168
  %v170 = vpop.f32.mrb[0].mxu0
  %171 = vdwg.mxu0
  %172 = vmatprep.subr.mxu0 0.0
  %173 = vmatpush1.msra.mxu0 %v71
  %174 = vmatprep.subr.mxu0 0.0
  %175 = vmatpush1.msra.mxu0 %v72
  %176 = vmatprep.subr.mxu0 0.0
  %177 = vmatpush1.msra.mxu0 %v73
  %178 = vmatprep.subr.mxu0 0.0
  %179 = vmatpush1.msra.mxu0 %v74
  %180 = vmatprep.subr.mxu0 0.0
  %181 = vmatpush1.msra.mxu0 %v75
  %182 = vmatprep.subr.mxu0 0.0
  %183 = vmatpush1.msra.mxu0 %v76
  %184 = vmatprep.subr.mxu0 0.0
  %185 = vmatpush1.msra.mxu0 %v77
  %186 = vmatprep.subr.mxu0 0.0
  %187 = vmatpush1.msra.mxu0 %v78
  %188 = vmatprep.subr.mxu0 0.0
  %189 = vmatpush1.msra.mxu0 %v79
  %190 = vmatprep.subr.mxu0 0.0
  %191 = vmatpush1.msra.mxu0 %v80
  %192 = vmatprep.subr.mxu0 0.0
  %193 = vmatpush1.msra.mxu0 %v81
  %194 = vmatprep.subr.mxu0 0.0
  %195 = vmatpush1.msra.mxu0 %v82
  %196 = vmatprep.subr.mxu0 0.0
  %197 = vmatpush1.msra.mxu0 %v83
  %198 = vmatprep.subr.mxu0 0.0
  %199 = vmatpush1.msra.mxu0 %v84
  %200 = vmatprep.subr.mxu0 0.0
  %201 = vmatpush1.msra.mxu0 %v85
  %202 = vmatprep.subr.mxu0 0.0
  %203 = vmatpush1.msra.mxu0 %v86
  %204 = vmatprep.subr.mxu0 0.0
  %205 = vmatpush1.msra.mxu0 0.0
  %206 = vmatprep.subr.mxu0 0.0
  %207 = vmatpush1.msra.mxu0 0.0
  %208 = vmatprep.subr.mxu0 0.0
  %209 = vmatpush1.msra.mxu0 0.0
  %210 = vmatprep.subr.mxu0 0.0
  %211 = vmatpush1.msra.mxu0 0.0
  %212 = vmatprep.subr.mxu0 0.0
  %213 = vmatpush1.msra.mxu0 0.0
  %214 = vmatprep.subr.mxu0 0.0
  %215 = vmatpush1.msra.mxu0 0.0
  %216 = vmatprep.subr.mxu0 0.0
  %217 = vmatpush1.msra.mxu0 0.0
  %218 = vmatprep.subr.mxu0 0.0
  %219 = vmatpush1.msra.mxu0 0.0
  %220 = vmatprep.subr.mxu0 0.0
  %221 = vmatpush1.msra.mxu0 0.0
  %222 = vmatprep.subr.mxu0 0.0
  %223 = vmatpush1.msra.mxu0 0.0
  %224 = vmatprep.subr.mxu0 0.0
  %225 = vmatpush1.msra.mxu0 0.0
  %226 = vmatprep.subr.mxu0 0.0
  %227 = vmatpush1.msra.mxu0 0.0
  %228 = vmatprep.subr.mxu0 0.0
  %229 = vmatpush1.msra.mxu0 0.0
  %230 = vmatprep.subr.mxu0 0.0
  %231 = vmatpush1.msra.mxu0 0.0
  %232 = vmatprep.subr.mxu0 0.0
  %233 = vmatpush1.msra.mxu0 0.0
  %234 = vmatprep.subr.mxu0 0.0
  %235 = vmatpush1.msra.mxu0 0.0
  %236 = vmatprep.mubr.f32.mxu0 0.0
  %237 = vmatmul.mubr.f32.gmra.mrb[0].mxu0 %v30
  %v238 = vpop.f32.mrb[0].mxu0
  %v239 = vadd.f32 %v154, %v238
  %v240 = vpop.f32.mrb[0].mxu0
  %241 = vmatprep.mubr.f32.mxu0 0.0
  %242 = vmatmul.mubr.f32.gmra.mrb[0].mxu0 %v31
  %v243 = vpop.f32.mrb[0].mxu0
  %v244 = vadd.f32 %v159, %v243
  %v245 = vpop.f32.mrb[0].mxu0
  %246 = vmatprep.mubr.f32.mxu0 0.0
  %247 = vmatmul.mubr.f32.gmra.mrb[0].mxu0 %v37
  %v248 = vpop.f32.mrb[0].mxu0
  %v249 = vadd.f32 %v164, %v248
  %v250 = vpop.f32.mrb[0].mxu0
  %251 = vmatprep.mubr.f32.mxu0 0.0
  %252 = vmatmul.mubr.f32.gmra.mrb[0].mxu0 %v38
  %v253 = vpop.f32.mrb[0].mxu0
  %v254 = vadd.f32 %v169, %v253
  %v255 = vpop.f32.mrb[0].mxu0
  %256 = vdwg.mxu0
  %v257 = vld [vmem:[%s2] sm:$0x1]
  %v259 = vlaneseq
  %v260 = vshrl.u32 %v259, 7
  %v261 = vsub.s32 0, %v260
  %v262 = vrot.slane %v257, %v261
  %v264 = vmul.f32 %v239, %v262
  %v265 = vmul.f32 %v244, %v262
  %v266 = vmul.f32 %v249, %v262
  %v267 = vmul.f32 %v254, %v262
  %v268 = vld [vmem:[%s3] sm:$0x1]
  %v270 = vlaneseq
  %v271 = vshrl.u32 %v270, 7
  %v272 = vsub.s32 0, %v271
  %v273 = vrot.slane %v268, %v272
  %v275 = vadd.f32 %v264, %v273
  %v276 = vadd.f32 %v265, %v273
  %v277 = vadd.f32 %v266, %v273
  %v278 = vadd.f32 %v267, %v273
  %v279 = vmax.f32 %v275, 0.0
  %v280 = vmax.f32 %v276, 0.0
  %v281 = vmax.f32 %v277, 0.0
  %v282 = vmax.f32 %v278, 0.0
  %vm285 = vcmask 1040384
  %v286 = vrot.slane %v279, 7
  %v287 = vrot.slane %v280, 7
  %v288 = vsel %vm285, %v286, %v287
  %v292 = vsel %vm285, 0.0, %v286
  %v293 = vsel %vm285, %v287, 0.0
  %vm296 = vcmask 1046528
  %v297 = vrot.slane %v292, 1
  %v298 = vrot.slane %v288, 1
  %v299 = vsel %vm296, %v297, %v298
  %v300 = vrot.slane %v293, 1
  %v301 = vsel %vm296, %v298, %v300
  %vm304 = vcmask 1045504
  %v305 = vrot.slane %v292, 2
  %v306 = vrot.slane %v288, 2
  %v307 = vsel %vm304, %v305, %v306
  %v308 = vrot.slane %v293, 2
  %v309 = vsel %vm304, %v306, %v308
  %v314 = vrot.slane %v281, 7
  %v315 = vrot.slane %v282, 7
  %v316 = vsel %vm285, %v314, %v315
  %v320 = vsel %vm285, 0.0, %v314
  %v321 = vsel %vm285, %v315, 0.0
  %v324 = vrot.slane %v320, 1
  %v325 = vrot.slane %v316, 1
  %v326 = vsel %vm296, %v324, %v325
  %v327 = vrot.slane %v321, 1
  %v328 = vsel %vm296, %v325, %v327
  %v331 = vrot.slane %v320, 2
  %v332 = vrot.slane %v316, 2
  %v333 = vsel %vm304, %v331, %v332
  %v334 = vrot.slane %v321, 2
  %v335 = vsel %vm304, %v332, %v334
  %v338 = vld [vmem:[%s4] sm:$0xff]
  %v339 = vld [vmem:[%s4 + $0x8] sm:$0xff]
  %v340 = vld [vmem:[%s4 + $0x10] sm:$0xff]
  %v341 = vld [vmem:[%s4 + $0x18] sm:$0xff]
  %v342 = vld [vmem:[%s4 + $0x20] sm:$0xff]
  %v343 = vld [vmem:[%s4 + $0x28] sm:$0xff]
  %v344 = vld [vmem:[%s4 + $0x30] sm:$0xff]
  %v345 = vld [vmem:[%s4 + $0x38] sm:$0xff]
  %v346 = vld [vmem:[%s4 + $0x40] sm:$0xff]
  %v347 = vld [vmem:[%s4 + $0x48] sm:$0xff]
  %v348 = vld [vmem:[%s4 + $0x50] sm:$0xff]
  %v349 = vld [vmem:[%s4 + $0x58] sm:$0xff]
  %v350 = vld [vmem:[%s4 + $0x60] sm:$0xff]
  %v351 = vld [vmem:[%s4 + $0x68] sm:$0xff]
  %v352 = vld [vmem:[%s4 + $0x70] sm:$0xff]
  %v353 = vld [vmem:[%s4 + $0x78] sm:$0xff]
  %v354 = vld [vmem:[%s4 + $0x80] sm:$0xff]
  %v355 = vld [vmem:[%s4 + $0x88] sm:$0xff]
  %v356 = vld [vmem:[%s4 + $0x90] sm:$0xff]
  %v357 = vld [vmem:[%s4 + $0x98] sm:$0xff]
  %v358 = vld [vmem:[%s4 + $0xa0] sm:$0xff]
  %v359 = vld [vmem:[%s4 + $0xa8] sm:$0xff]
  %v360 = vld [vmem:[%s4 + $0xb0] sm:$0xff]
  %v361 = vld [vmem:[%s4 + $0xb8] sm:$0xff]
  %v362 = vld [vmem:[%s4 + $0xc0] sm:$0xff]
  %v363 = vld [vmem:[%s4 + $0xc8] sm:$0xff]
  %v364 = vld [vmem:[%s4 + $0xd0] sm:$0xff]
  %v365 = vld [vmem:[%s4 + $0xd8] sm:$0xff]
  %v366 = vld [vmem:[%s4 + $0xe0] sm:$0xff]
  %v367 = vld [vmem:[%s4 + $0xe8] sm:$0xff]
  %v368 = vld [vmem:[%s4 + $0xf0] sm:$0xff]
  %v369 = vld [vmem:[%s4 + $0xf8] sm:$0xff]
  %v370 = vld [vmem:[%s4 + $0x100] sm:$0xff]
  %v371 = vld [vmem:[%s4 + $0x108] sm:$0xff]
  %v372 = vld [vmem:[%s4 + $0x110] sm:$0xff]
  %v373 = vld [vmem:[%s4 + $0x118] sm:$0xff]
  %v374 = vld [vmem:[%s4 + $0x120] sm:$0xff]
  %v375 = vld [vmem:[%s4 + $0x128] sm:$0xff]
  %v376 = vld [vmem:[%s4 + $0x130] sm:$0xff]
  %v377 = vld [vmem:[%s4 + $0x138] sm:$0xff]
  %v378 = vld [vmem:[%s4 + $0x140] sm:$0xff]
  %v379 = vld [vmem:[%s4 + $0x148] sm:$0xff]
  %v380 = vld [vmem:[%s4 + $0x150] sm:$0xff]
  %v381 = vld [vmem:[%s4 + $0x158] sm:$0xff]
  %v382 = vld [vmem:[%s4 + $0x160] sm:$0xff]
  %v383 = vld [vmem:[%s4 + $0x168] sm:$0xff]
  %v384 = vld [vmem:[%s4 + $0x170] sm:$0xff]
  %v385 = vld [vmem:[%s4 + $0x178] sm:$0xff]
  %386 = vmatprep.subr.mxu0 0.0
  %387 = vmatpush1.msra.mxu0 %v338
  %388 = vmatprep.subr.mxu0 0.0
  %389 = vmatpush1.msra.mxu0 %v339
  %390 = vmatprep.subr.mxu0 0.0
  %391 = vmatpush1.msra.mxu0 %v340
  %392 = vmatprep.subr.mxu0 0.0
  %393 = vmatpush1.msra.mxu0 %v341
  %394 = vmatprep.subr.mxu0 0.0
  %395 = vmatpush1.msra.mxu0 %v342
  %396 = vmatprep.subr.mxu0 0.0
  %397 = vmatpush1.msra.mxu0 %v343
  %398 = vmatprep.subr.mxu0 0.0
  %399 = vmatpush1.msra.mxu0 %v344
  %400 = vmatprep.subr.mxu0 0.0
  %401 = vmatpush1.msra.mxu0 %v345
  %402 = vmatprep.subr.mxu0 0.0
  %403 = vmatpush1.msra.mxu0 %v346
  %404 = vmatprep.subr.mxu0 0.0
  %405 = vmatpush1.msra.mxu0 %v347
  %406 = vmatprep.subr.mxu0 0.0
  %407 = vmatpush1.msra.mxu0 %v348
  %408 = vmatprep.subr.mxu0 0.0
  %409 = vmatpush1.msra.mxu0 %v349
  %410 = vmatprep.subr.mxu0 0.0
  %411 = vmatpush1.msra.mxu0 %v350
  %412 = vmatprep.subr.mxu0 0.0
  %413 = vmatpush1.msra.mxu0 %v351
  %414 = vmatprep.subr.mxu0 0.0
  %415 = vmatpush1.msra.mxu0 %v352
  %416 = vmatprep.subr.mxu0 0.0
  %417 = vmatpush1.msra.mxu0 %v353
  %418 = vmatprep.subr.mxu0 0.0
  %419 = vmatpush1.msra.mxu0 %v354
  %420 = vmatprep.subr.mxu0 0.0
  %421 = vmatpush1.msra.mxu0 %v355
  %422 = vmatprep.subr.mxu0 0.0
  %423 = vmatpush1.msra.mxu0 %v356
  %424 = vmatprep.subr.mxu0 0.0
  %425 = vmatpush1.msra.mxu0 %v357
  %426 = vmatprep.subr.mxu0 0.0
  %427 = vmatpush1.msra.mxu0 %v358
  %428 = vmatprep.subr.mxu0 0.0
  %429 = vmatpush1.msra.mxu0 %v359
  %430 = vmatprep.subr.mxu0 0.0
  %431 = vmatpush1.msra.mxu0 %v360
  %432 = vmatprep.subr.mxu0 0.0
  %433 = vmatpush1.msra.mxu0 %v361
  %434 = vmatprep.subr.mxu0 0.0
  %435 = vmatpush1.msra.mxu0 %v362
  %436 = vmatprep.subr.mxu0 0.0
  %437 = vmatpush1.msra.mxu0 %v363
  %438 = vmatprep.subr.mxu0 0.0
  %439 = vmatpush1.msra.mxu0 %v364
  %440 = vmatprep.subr.mxu0 0.0
  %441 = vmatpush1.msra.mxu0 %v365
  %442 = vmatprep.subr.mxu0 0.0
  %443 = vmatpush1.msra.mxu0 %v366
  %444 = vmatprep.subr.mxu0 0.0
  %445 = vmatpush1.msra.mxu0 %v367
  %446 = vmatprep.subr.mxu0 0.0
  %447 = vmatpush1.msra.mxu0 %v368
  %448 = vmatprep.subr.mxu0 0.0
  %449 = vmatpush1.msra.mxu0 %v369
  %450 = vmatprep.mubr.f32.mxu0 %v299
  %451 = vmatmul.mubr.f32.gmra.mrb[0].mxu0 %v292
  %v452 = vpop.f32.mrb[0].mxu0
  %v453 = vadd.f32 0.0, %v452
  %v454 = vpop.f32.mrb[0].mxu0
  %455 = vmatprep.mubr.f32.mxu0 %v301
  %456 = vmatmul.mubr.f32.gmra.mrb[0].mxu0 %v288
  %v457 = vpop.f32.mrb[0].mxu0
  %v458 = vadd.f32 0.0, %v457
  %v459 = vpop.f32.mrb[0].mxu0
  %460 = vmatprep.mubr.f32.mxu0 %v326
  %461 = vmatmul.mubr.f32.gmra.mrb[0].mxu0 %v320
  %v462 = vpop.f32.mrb[0].mxu0
  %v463 = vadd.f32 0.0, %v462
  %v464 = vpop.f32.mrb[0].mxu0
  %465 = vmatprep.mubr.f32.mxu0 %v328
  %466 = vmatmul.mubr.f32.gmra.mrb[0].mxu0 %v316
  %v467 = vpop.f32.mrb[0].mxu0
  %v468 = vadd.f32 0.0, %v467
  %v469 = vpop.f32.mrb[0].mxu0
  %470 = vdwg.mxu0
  %471 = vmatprep.subr.mxu0 0.0
  %472 = vmatpush1.msra.mxu0 %v370
  %473 = vmatprep.subr.mxu0 0.0
  %474 = vmatpush1.msra.mxu0 %v371
  %475 = vmatprep.subr.mxu0 0.0
  %476 = vmatpush1.msra.mxu0 %v372
  %477 = vmatprep.subr.mxu0 0.0
  %478 = vmatpush1.msra.mxu0 %v373
  %479 = vmatprep.subr.mxu0 0.0
  %480 = vmatpush1.msra.mxu0 %v374
  %481 = vmatprep.subr.mxu0 0.0
  %482 = vmatpush1.msra.mxu0 %v375
  %483 = vmatprep.subr.mxu0 0.0
  %484 = vmatpush1.msra.mxu0 %v376
  %485 = vmatprep.subr.mxu0 0.0
  %486 = vmatpush1.msra.mxu0 %v377
  %487 = vmatprep.subr.mxu0 0.0
  %488 = vmatpush1.msra.mxu0 %v378
  %489 = vmatprep.subr.mxu0 0.0
  %490 = vmatpush1.msra.mxu0 %v379
  %491 = vmatprep.subr.mxu0 0.0
  %492 = vmatpush1.msra.mxu0 %v380
  %493 = vmatprep.subr.mxu0 0.0
  %494 = vmatpush1.msra.mxu0 %v381
  %495 = vmatprep.subr.mxu0 0.0
  %496 = vmatpush1.msra.mxu0 %v382
  %497 = vmatprep.subr.mxu0 0.0
  %498 = vmatpush1.msra.mxu0 %v383
  %499 = vmatprep.subr.mxu0 0.0
  %500 = vmatpush1.msra.mxu0 %v384
  %501 = vmatprep.subr.mxu0 0.0
  %502 = vmatpush1.msra.mxu0 %v385
  %503 = vmatprep.subr.mxu0 0.0
  %504 = vmatpush1.msra.mxu0 0.0
  %505 = vmatprep.subr.mxu0 0.0
  %506 = vmatpush1.msra.mxu0 0.0
  %507 = vmatprep.subr.mxu0 0.0
  %508 = vmatpush1.msra.mxu0 0.0
  %509 = vmatprep.subr.mxu0 0.0
  %510 = vmatpush1.msra.mxu0 0.0
  %511 = vmatprep.subr.mxu0 0.0
  %512 = vmatpush1.msra.mxu0 0.0
  %513 = vmatprep.subr.mxu0 0.0
  %514 = vmatpush1.msra.mxu0 0.0
  %515 = vmatprep.subr.mxu0 0.0
  %516 = vmatpush1.msra.mxu0 0.0
  %517 = vmatprep.subr.mxu0 0.0
  %518 = vmatpush1.msra.mxu0 0.0
  %519 = vmatprep.subr.mxu0 0.0
  %520 = vmatpush1.msra.mxu0 0.0
  %521 = vmatprep.subr.mxu0 0.0
  %522 = vmatpush1.msra.mxu0 0.0
  %523 = vmatprep.subr.mxu0 0.0
  %524 = vmatpush1.msra.mxu0 0.0
  %525 = vmatprep.subr.mxu0 0.0
  %526 = vmatpush1.msra.mxu0 0.0
  %527 = vmatprep.subr.mxu0 0.0
  %528 = vmatpush1.msra.mxu0 0.0
  %529 = vmatprep.subr.mxu0 0.0
  %530 = vmatpush1.msra.mxu0 0.0
  %531 = vmatprep.subr.mxu0 0.0
  %532 = vmatpush1.msra.mxu0 0.0
  %533 = vmatprep.subr.mxu0 0.0
  %534 = vmatpush1.msra.mxu0 0.0
  %535 = vmatprep.mubr.f32.mxu0 0.0
  %536 = vmatmul.mubr.f32.gmra.mrb[0].mxu0 %v307
  %v537 = vpop.f32.mrb[0].mxu0
  %v538 = vadd.f32 %v453, %v537
  %v539 = vpop.f32.mrb[0].mxu0
  %540 = vmatprep.mubr.f32.mxu0 0.0
  %541 = vmatmul.mubr.f32.gmra.mrb[0].mxu0 %v309
  %v542 = vpop.f32.mrb[0].mxu0
  %v543 = vadd.f32 %v458, %v542
  %v544 = vpop.f32.mrb[0].mxu0
  %545 = vmatprep.mubr.f32.mxu0 0.0
  %546 = vmatmul.mubr.f32.gmra.mrb[0].mxu0 %v333
  %v547 = vpop.f32.mrb[0].mxu0
  %v548 = vadd.f32 %v463, %v547
  %v549 = vpop.f32.mrb[0].mxu0
  %550 = vmatprep.mubr.f32.mxu0 0.0
  %551 = vmatmul.mubr.f32.gmra.mrb[0].mxu0 %v335
  %v552 = vpop.f32.mrb[0].mxu0
  %v553 = vadd.f32 %v468, %v552
  %v554 = vpop.f32.mrb[0].mxu0
  %555 = vdwg.mxu0
  %v556 = vld [vmem:[%s5] sm:$0x1]
  %v558 = vlaneseq
  %v559 = vshrl.u32 %v558, 7
  %v560 = vsub.s32 0, %v559
  %v561 = vrot.slane %v556, %v560
  %v563 = vmul.f32 %v538, %v561
  %v564 = vmul.f32 %v543, %v561
  %v565 = vmul.f32 %v548, %v561
  %v566 = vmul.f32 %v553, %v561
  %v567 = vld [vmem:[%s6] sm:$0x1]
  %v569 = vlaneseq
  %v570 = vshrl.u32 %v569, 7
  %v571 = vsub.s32 0, %v570
  %v572 = vrot.slane %v567, %v571
  %v574 = vadd.f32 %v563, %v572
  %v575 = vadd.f32 %v564, %v572
  %v576 = vadd.f32 %v565, %v572
  %v577 = vadd.f32 %v566, %v572
  %v578 = vmax.f32 %v574, 0.0
  %v579 = vmax.f32 %v575, 0.0
  %v580 = vmax.f32 %v576, 0.0
  %v581 = vmax.f32 %v577, 0.0
  %582 = vst [vmem:[%s7] sm:$0xff] %v578
  %583 = vst [vmem:[%s7 + $0x8] sm:$0xff] %v579
  %s584 = scalar_lea.vmem %s7, 16
  %585 = vst [vmem:[%s584] sm:$0xff] %v580
  %586 = vst [vmem:[%s584 + $0x8] sm:$0xff] %v581
  // Predicated region
  $region30: #{_lambda_.1} parent=0 // pred_check
    _
  $region31: #{_lambda_.1} parent=0 // pred_check_branch
    %588 = sbr.rel (0) target = $region33
  $region32: #{_lambda_.1} parent=0 // pred_region
    _
  $region33: #{_lambda_.1} parent=0 // pred_fallthru
    _
  // Predicated region
  $region34: #{_lambda_.1} parent=0 // pred_check
    _
  $region35: #{_lambda_.1} parent=0 // pred_check_branch
    %590 = sbr.rel (0) target = $region37
  $region36: #{_lambda_.1} parent=0 // pred_region
    _
  $region37: #{_lambda_.1} parent=0 // pred_fallthru
    _

</llo_original>
